<compile_context>
chip_gen: v7x
topology: tpu7x:2x2x1
jax: 0.10.0
libtpu: 0.0.40
codegen_flags: <defaults>
</compile_context>

<pallas_src>
import functools

import jax
import jax.numpy as jnp
from jax.experimental import pallas as pl
from jax.experimental.pallas import tpu as pltpu


# ---------------------------- tile / VMEM policy -----------------------------
# Budget for the two double-buffered x tiles (the dominant VMEM consumer).
# 32 MiB keeps the kernel comfortably inside v7x's 64 MiB-per-TensorCore VMEM.
_X_TILE_BUDGET_BYTES = 32 * 1024 * 1024
# Scoped VMEM limit handed to Mosaic (defaults of 16/32 MiB would reject
# roofline-sized tiles).  48 MiB is below physical VMEM on v5e/v6e/v7x.
_VMEM_LIMIT_BYTES = 48 * 1024 * 1024
# 512-1024 row tiles already reach ~85% of the HBM roofline on v6e.
_MAX_TILE_N = 1024


def _round_up(x, m):
    return (x + m - 1) // m * m


def _choose_tile_n(n, c, x_itemsize):
    bytes_per_row = c * x_itemsize
    t = _X_TILE_BUDGET_BYTES // (2 * bytes_per_row)   # 2 pipeline buffers of x
    t = max(16, (t // 16) * 16)   # multiple of 16: bf16 sublane packing (and 8-row tiling)
    t = min(t, _MAX_TILE_N)
    t = min(t, _round_up(n, 16))  # no point exceeding the (padded) batch
    return int(t)


# --------------------------------- kernel ------------------------------------
def _label_smoothing_nll_kernel(x_ref, tgt_ref, out_ref, *,
                                smoothing, confidence, n_valid):
    i = pl.program_id(0)
    tile_n, c = x_ref.shape

    x = x_ref[...].astype(jnp.float32)        # (tile_n, C), f32 compute
    tgt = tgt_ref[...]                        # (tile_n, 1) int32

    # Numerically-stable per-row log-sum-exp; logprobs never materialized.
    m = jnp.max(x, axis=-1, keepdims=True)                        # (tile_n, 1)
    z = x - m                                                     # (tile_n, C)
    lse = jnp.log(jnp.sum(jnp.exp(z), axis=-1, keepdims=True))    # (tile_n, 1)

    # Gather z[row, target[row]] via a one-hot select (no dynamic gather on TPU).
    col = jax.lax.broadcasted_iota(jnp.int32, z.shape, 1)
    z_tgt = jnp.sum(jnp.where(col == tgt, z, 0.0), axis=-1, keepdims=True)
    sum_z = jnp.sum(z, axis=-1, keepdims=True)

    nll = lse - z_tgt                         # -logprobs[row, target[row]]
    smooth = lse - sum_z * (1.0 / c)          # -mean(logprobs, axis=-1)
    per_row = confidence * nll + smoothing * smooth               # (tile_n, 1)

    # Mask rows past the true batch size (partial last tile reads padding).
    row = jax.lax.broadcasted_iota(jnp.int32, (tile_n, 1), 0) + i * tile_n
    per_row = jnp.where(row < n_valid, per_row, 0.0)

    # Per-tile partial sum, written as a lane-dense (1, 8, 128) block so the
    # store is a full unmasked tile and no cross-step accumulator is needed.
    partial = jnp.sum(per_row, axis=0, keepdims=True)             # (1, 1)
    out_ref[...] = jnp.broadcast_to(partial, (1, 8, 128))


# -------------------------------- wrapper ------------------------------------
def label_smoothing_nll_loss(x, target, smoothing=0.0, *, tile_n=None):
    """x: (N, C) float logits (f32 or bf16); target: (N,) int class indices.

    Returns the scalar (f32) label-smoothed NLL loss, matching
    LabelSmoothingNLLLoss(smoothing).forward(x, target).
    """
    n, c = x.shape
    confidence = 1.0 - smoothing
    if tile_n is None:
        tile_n = _choose_tile_n(n, c, x.dtype.itemsize)
    num_tiles = pl.cdiv(n, tile_n)

    tgt2d = target.astype(jnp.int32).reshape(n, 1)

    kernel = functools.partial(
        _label_smoothing_nll_kernel,
        smoothing=float(smoothing),
        confidence=float(confidence),
        n_valid=n,
    )

    partials = pl.pallas_call(
        kernel,
        out_shape=jax.ShapeDtypeStruct((num_tiles, 8, 128), jnp.float32),
        grid_spec=pltpu.PrefetchScalarGridSpec(
            num_scalar_prefetch=0,
            grid=(num_tiles,),
            in_specs=[
                pl.BlockSpec((tile_n, c), lambda i: (i, 0)),
                pl.BlockSpec((tile_n, 1), lambda i: (i, 0)),
            ],
            out_specs=pl.BlockSpec((1, 8, 128), lambda i: (i, 0, 0)),
        ),
        compiler_params=pltpu.CompilerParams(
            dimension_semantics=("parallel",),   # independent tiles -> megacore on v7x
            vmem_limit_bytes=_VMEM_LIMIT_BYTES,
        ),
    )(x, tgt2d)

    # Tiny cross-tile reduction + batch mean outside the kernel (keeps the grid
    # axis "parallel" and avoids O(N*eps) serial scalar accumulation error).
    return jnp.sum(partials[:, 0, 0]) / jnp.float32(n)


# ------------------------------- reference -----------------------------------
def _reference(x, target, smoothing):
    confidence = 1.0 - smoothing
    logprobs = jax.nn.log_softmax(x.astype(jnp.float32), axis=-1)
    idx = target[:, None].astype(jnp.int32)
    nll = -jnp.take_along_axis(logprobs, idx, axis=-1)[:, 0]
    smooth = -jnp.mean(logprobs, axis=-1)
    return jnp.mean(confidence * nll + smoothing * smooth)


if __name__ == "__main__":
    key = jax.random.PRNGKey(0)
    k1, k2, k3, k4, k5, k6 = jax.random.split(key, 6)

    # Case 1: small, lane-aligned shapes (single tile).
    n1, c1, s1 = 16, 128, 0.1
    x1 = jax.random.normal(k1, (n1, c1), dtype=jnp.float32)
    t1 = jax.random.randint(k2, (n1,), 0, c1, dtype=jnp.int32)
    out1 = jax.block_until_ready(label_smoothing_nll_loss(x1, t1, smoothing=s1))
    ref1 = _reference(x1, t1, s1)
    assert jnp.allclose(out1, ref1, atol=1e-5, rtol=1e-5), (out1, ref1)

    # Case 2: batch not a multiple of the tile -> exercises the row mask.
    n2, c2, s2 = 13, 256, 0.2
    x2 = jax.random.normal(k3, (n2, c2), dtype=jnp.float32)
    t2 = jax.random.randint(k4, (n2,), 0, c2, dtype=jnp.int32)
    out2 = jax.block_until_ready(label_smoothing_nll_loss(x2, t2, smoothing=s2))
    ref2 = _reference(x2, t2, s2)
    assert jnp.allclose(out2, ref2, atol=1e-5, rtol=1e-5), (out2, ref2)

    # Case 3: multi-tile grid -> exercises the parallel axis + partial sums.
    n3, c3, s3 = 40, 128, 0.05
    x3 = jax.random.normal(k5, (n3, c3), dtype=jnp.float32)
    t3 = jax.random.randint(k6, (n3,), 0, c3, dtype=jnp.int32)
    out3 = jax.block_until_ready(
        label_smoothing_nll_loss(x3, t3, smoothing=s3, tile_n=16))
    ref3 = _reference(x3, t3, s3)
    assert jnp.allclose(out3, ref3, atol=1e-5, rtol=1e-5), (out3, ref3)

    print("KERNEL_OK")
</pallas_src>

<mosaic_0001>
module attributes {stable_mosaic.version = 11 : i64} {
  func.func @_label_smoothing_nll_kernel(%arg0: i32, %arg1: memref<16x128xf32, #tpu.memory_space<vmem>>, %arg2: memref<16x1xi32, #tpu.memory_space<vmem>>, %arg3: memref<1x8x128xf32, #tpu.memory_space<vmem>>) attributes {dimension_semantics = [#tpu.dimension_semantics<parallel>], iteration_bounds = array<i64: 1>, scalar_prefetch = 0 : i64, scratch_operands = 0 : i64, tpu.core_type = #tpu.core_type<tc>, window_params = [{transform_indices = @transform_0, window_bounds = array<i64: 16, 128>}, {transform_indices = @transform_1, window_bounds = array<i64: 16, 1>}, {transform_indices = @transform_2, window_bounds = array<i64: 1, 8, 128>}]} {
    %c0 = arith.constant 0 : index
    %c0_0 = arith.constant 0 : index
    %0 = vector.load %arg1[%c0, %c0_0] : memref<16x128xf32, #tpu.memory_space<vmem>>, vector<16x128xf32>
    %c0_1 = arith.constant 0 : index
    %c0_2 = arith.constant 0 : index
    %1 = vector.load %arg2[%c0_1, %c0_2] : memref<16x1xi32, #tpu.memory_space<vmem>>, vector<16x1xi32>
    %cst = arith.constant dense<0xFF800000> : vector<16xf32>
    %2 = vector.multi_reduction <maximumf>, %0, %cst [1] : vector<16x128xf32> to vector<16xf32>
    %3 = vector.shape_cast %2 : vector<16xf32> to vector<16x1xf32>
    %4 = vector.broadcast %3 : vector<16x1xf32> to vector<16x128xf32>
    %5 = arith.subf %0, %4 : vector<16x128xf32>
    %6 = math.exp %5 : vector<16x128xf32>
    %cst_3 = arith.constant dense<0.000000e+00> : vector<16xf32>
    %7 = vector.multi_reduction <add>, %6, %cst_3 [1] : vector<16x128xf32> to vector<16xf32>
    %8 = vector.shape_cast %7 : vector<16xf32> to vector<16x1xf32>
    %9 = math.log %8 : vector<16x1xf32>
    %10 = tpu.iota {dimensions = array<i32: 1>} : vector<16x128xi32>
    %11 = vector.broadcast %1 : vector<16x1xi32> to vector<16x128xi32>
    %12 = arith.cmpi eq, %10, %11 : vector<16x128xi32>
    %cst_4 = arith.constant 0.000000e+00 : f32
    %13 = vector.broadcast %cst_4 : f32 to vector<16x128xf32>
    %14 = arith.select %12, %5, %13 : vector<16x128xi1>, vector<16x128xf32>
    %cst_5 = arith.constant dense<0.000000e+00> : vector<16xf32>
    %15 = vector.multi_reduction <add>, %14, %cst_5 [1] : vector<16x128xf32> to vector<16xf32>
    %16 = vector.shape_cast %15 : vector<16xf32> to vector<16x1xf32>
    %cst_6 = arith.constant dense<0.000000e+00> : vector<16xf32>
    %17 = vector.multi_reduction <add>, %5, %cst_6 [1] : vector<16x128xf32> to vector<16xf32>
    %18 = vector.shape_cast %17 : vector<16xf32> to vector<16x1xf32>
    %19 = arith.subf %9, %16 : vector<16x1xf32>
    %cst_7 = arith.constant 7.812500e-03 : f32
    %20 = vector.broadcast %cst_7 : f32 to vector<16x1xf32>
    %21 = arith.mulf %18, %20 : vector<16x1xf32>
    %22 = arith.subf %9, %21 : vector<16x1xf32>
    %cst_8 = arith.constant 0.899999976 : f32
    %23 = vector.broadcast %cst_8 : f32 to vector<16x1xf32>
    %24 = arith.mulf %23, %19 : vector<16x1xf32>
    %cst_9 = arith.constant 1.000000e-01 : f32
    %25 = vector.broadcast %cst_9 : f32 to vector<16x1xf32>
    %26 = arith.mulf %25, %22 : vector<16x1xf32>
    %27 = arith.addf %24, %26 : vector<16x1xf32>
    %28 = tpu.iota {dimensions = array<i32: 0>} : vector<16x1xi32>
    %c16_i32 = arith.constant 16 : i32
    %29 = arith.muli %arg0, %c16_i32 : i32
    %30 = vector.broadcast %29 : i32 to vector<16x1xi32>
    %31 = arith.addi %28, %30 : vector<16x1xi32>
    %c16_i32_10 = arith.constant 16 : i32
    %32 = vector.broadcast %c16_i32_10 : i32 to vector<16x1xi32>
    %33 = arith.cmpi slt, %31, %32 : vector<16x1xi32>
    %cst_11 = arith.constant 0.000000e+00 : f32
    %34 = vector.broadcast %cst_11 : f32 to vector<16x1xf32>
    %35 = arith.select %33, %27, %34 : vector<16x1xi1>, vector<16x1xf32>
    %cst_12 = arith.constant dense<0.000000e+00> : vector<1xf32>
    %36 = vector.multi_reduction <add>, %35, %cst_12 [0] : vector<16x1xf32> to vector<1xf32>
    %37 = vector.shape_cast %36 : vector<1xf32> to vector<1x1xf32>
    %38 = vector.shape_cast %37 : vector<1x1xf32> to vector<1x1x1xf32>
    %39 = vector.broadcast %38 : vector<1x1x1xf32> to vector<1x8x128xf32>
    %c0_13 = arith.constant 0 : index
    %c0_14 = arith.constant 0 : index
    %c0_15 = arith.constant 0 : index
    %40 = vector.load %arg3[%c0_13, %c0_14, %c0_15] : memref<1x8x128xf32, #tpu.memory_space<vmem>>, vector<1x8x128xf32>
    tpu.vector_store %arg3[%c0_13, %c0_14, %c0_15], %39 {strides = array<i32>} : memref<1x8x128xf32, #tpu.memory_space<vmem>>, vector<1x8x128xf32>,
    return
  }
  func.func @transform_0(%arg0: i32) -> (i32, i32) {
    %c0_i32 = arith.constant 0 : i32
    %c0_i32_0 = arith.constant 0 : i32
    return %arg0, %c0_i32 : i32, i32
  }
  func.func @transform_1(%arg0: i32) -> (i32, i32) {
    %c0_i32 = arith.constant 0 : i32
    %c0_i32_0 = arith.constant 0 : i32
    return %arg0, %c0_i32 : i32, i32
  }
  func.func @transform_2(%arg0: i32) -> (i32, i32, i32) {
    %c0_i32 = arith.constant 0 : i32
    %c0_i32_0 = arith.constant 0 : i32
    %c0_i32_1 = arith.constant 0 : i32
    return %arg0, %c0_i32, %c0_i32_0 : i32, i32, i32
  }
}

</mosaic_0001>

<llo_original>
// kernel: tpu_custom_call.1
$region0: #{tpu_custom_call.1}
  #allocation0 [shape = 'u32[]', space=smem, size = 0x4, offset = 0x4, fixed_abs, tag = 'smem constant byte address 0x4 - core index']
  #allocation1 [shape = 'u32[144,128]{1,0:T(1,128)}', space=vmem, size = 0x12000, scoped, tag = 'internal scratch']
  %s0 = inlined_call_operand.vmem [shape: f32[16,128], index: 0, kind: input, shape index: {}]
  %s1 = inlined_call_operand.vmem [shape: s32[16,1], index: 1, kind: input, shape index: {}]
  %s2 = inlined_call_operand.hbm [shape: f32[1,8,128], index: 2, kind: output, shape index: {}]
  %s3 = sld [smem:[#allocation0]]
  $region18: #{tpu_custom_call.1} parent=0
    _
  %s5 = ssub.s32 1, %s3
  %s6 = scalar_select 0, %s5, %s3
  $region1: #{tpu_custom_call.1} parent=0
    #allocation2 [shape = 'u8[4096]{0}', space=vmem, size = 0x1000, scoped, tag = 'output window, operand 0, single buffered']
    #allocation3 [shape = 's32[1]{0}', space=sflag, size = 0x4, scoped, tag = 'scoped memory for tpu_custom_call.1']
    %7 = vsyncpa [#allocation3], 0
    // Predicated region
    $region2: #{tpu_custom_call.1} parent=1 // pred_check
      _
    $region3: #{tpu_custom_call.1} parent=1 // pred_check_branch
      %9 = sbr.rel (0) target = $region5
    $region4: #{tpu_custom_call.1} parent=1 // pred_region
      _
    $region5: #{tpu_custom_call.1} parent=1 // pred_fallthru
      _
    // Predicated region
    $region6: #{tpu_custom_call.1} parent=1 // pred_check
      _
    $region7: #{tpu_custom_call.1} parent=1 // pred_check_branch
      %11 = sbr.rel (0) target = $region9
    $region8: #{tpu_custom_call.1} parent=1 // pred_region
      _
    $region9: #{tpu_custom_call.1} parent=1 // pred_fallthru
      _
    %v12 = vld [vmem:[%s0] sm:$0xff]
    %v13 = vld [vmem:[%s0 + $0x8] sm:$0xff]
    %v14 = vld [vmem:[%s1] sm:$0xff]
    %v15 = vld [vmem:[%s1 + $0x8] sm:$0xff]
    %16 = vmax.xlane.f32.xlu0 %v12
    %v17 = vpop.xlane.xlu0 %16
    %18 = vmax.xlane.f32.xlu0 %v13
    %v19 = vpop.xlane.xlu0 %18
    %v20 = vsub.f32 %v12, %v17
    %v21 = vsub.f32 %v13, %v19
    %v22 = vmul.f32 %v20, 1.442695
    %v23 = vpow.pop %v22
    %v24 = vmul.f32 %v21, 1.442695
    %v25 = vpow.pop %v24
    %26 = vadd.xlane.f32.xlu0 %v23
    %v27 = vpop.xlane.xlu0 %26
    %28 = vadd.xlane.f32.xlu0 %v25
    %v29 = vpop.xlane.xlu0 %28
    %v30 = vlog2.pop %v27
    %v31 = vmul.f32 %v30, 0.6931472
    %v32 = vlog2.pop %v29
    %v33 = vmul.f32 %v32, 0.6931472
    %v34 = vlaneseq
    %v35 = vand.u32 %v34, 127
    %36 = vset.pattern.permute.xlu0 0
    %37 = vperm.xlu0 %36, %v14
    %v38 = vpop.permute.xlu0 %37
    %39 = vset.pattern.permute.xlu0 0
    %40 = vperm.xlu0 %39, %v15
    %v41 = vpop.permute.xlu0 %40
    %vm42 = vcmp.eq.s32.totalorder %v35, %v38
    %vm43 = vcmp.eq.s32.totalorder %v35, %v41
    %v44 = vsel %vm42, %v20, 0.0
    %v45 = vsel %vm43, %v21, 0.0
    %46 = vadd.xlane.f32.xlu0 %v44
    %v47 = vpop.xlane.xlu0 %46
    %48 = vadd.xlane.f32.xlu0 %v45
    %v49 = vpop.xlane.xlu0 %48
    %50 = vadd.xlane.f32.xlu0 %v20
    %v51 = vpop.xlane.xlu0 %50
    %52 = vadd.xlane.f32.xlu0 %v21
    %v53 = vpop.xlane.xlu0 %52
    %v54 = vsub.f32 %v31, %v47
    %v55 = vsub.f32 %v33, %v49
    %v56 = vmul.f32 %v51, 0.0078125
    %v57 = vmul.f32 %v53, 0.0078125
    %v58 = vsub.f32 %v31, %v56
    %v59 = vsub.f32 %v33, %v57
    %v60 = vmul.f32 %v54, 0.9
    %v61 = vmul.f32 %v55, 0.9
    %v62 = vmul.f32 %v58, 0.1
    %v63 = vmul.f32 %v59, 0.1
    %v64 = vadd.f32 %v60, %v62
    %v65 = vadd.f32 %v61, %v63
    %v66 = vlaneseq
    %v67 = vshrl.u32 %v66, 7
    %v68 = vadd.s32 %v67, 8
    %s69 = smul.u32 0, 16
    %v70 = vstv %s69
    %v71 = vadd.s32 %v67, %v70
    %v72 = vadd.s32 %v68, %v70
    %vm73 = vcmp.lt.s32.totalorder %v71, 16
    %vm74 = vcmp.lt.s32.totalorder %v72, 16
    %v75 = vsel %vm73, %v64, 0.0
    %v76 = vsel %vm74, %v65, 0.0
    %v77 = vadd.f32 %v75, %v76
    %v78 = vrot.slane %v77, 4
    %v79 = vadd.f32 %v77, %v78
    %v80 = vrot.slane %v79, 2
    %v81 = vadd.f32 %v79, %v80
    %v82 = vrot.slane %v81, 1
    %v83 = vadd.f32 %v81, %v82
    %84 = vst [vmem:[#allocation2] sm:$0xff] %v83
    // Predicated region
    $region10: #{tpu_custom_call.1} parent=1 // pred_check
      _
    $region11: #{tpu_custom_call.1} parent=1 // pred_check_branch
      %86 = sbr.rel (0) target = $region13
    $region12: #{tpu_custom_call.1} parent=1 // pred_region
      %s88 = ssub.s32 128, 128
      %89 = vsyncadd [#allocation3], %s88
      %s91 = sshll.u32 [#allocation2], 4
      %s92 = int_to_ptr.vmem [resolvable:$true] %s91
      %94 = dma.vmem_to_hbm [thread:$0]  %s92, 128, %s2, [#allocation3]
    $region13: #{tpu_custom_call.1} parent=1 // pred_fallthru
      _
    // Predicated region
    $region14: #{tpu_custom_call.1} parent=1 // pred_check
      _
    $region15: #{tpu_custom_call.1} parent=1 // pred_check_branch
      %96 = sbr.rel (0) target = $region17
    $region16: #{tpu_custom_call.1} parent=1 // pred_region
      %97 = dma.done [#allocation3], 128
    $region17: #{tpu_custom_call.1} parent=1 // pred_fallthru
      _
    %98 = vsyncpa [#allocation3], 1

</llo_original>
